<compile_context>
chip_gen: v7x
topology: tpu7x:2x2x1
jax: 0.10.0
libtpu: 0.0.40
codegen_flags: <defaults>
</compile_context>

<pallas_src>
import functools

import jax
import jax.numpy as jnp
from jax.experimental import pallas as pl
from jax.experimental.pallas import tpu as pltpu


# ---------------------------------------------------------------------------
# Kernels
# ---------------------------------------------------------------------------
def _fc_kernel_single_k(x_ref, w_ref, b_ref, o_ref, *, activation):
    """K fits in one tile: no accumulator scratch, write the result directly."""
    y = jnp.dot(x_ref[...], w_ref[...], preferred_element_type=jnp.float32)
    y = y + b_ref[...].astype(jnp.float32)           # bias broadcast over rows
    if activation is not None:                        # IDENTITY -> None
        y = activation(y)
    o_ref[...] = y.astype(o_ref.dtype)


def _fc_kernel_multi_k(x_ref, w_ref, b_ref, o_ref, acc_ref, *, activation):
    """K split across grid axis 2 (last, 'arbitrary'): resident f32 accumulator."""
    k = pl.program_id(2)

    @pl.when(k == 0)
    def _():
        acc_ref[...] = jnp.zeros_like(acc_ref)

    acc_ref[...] += jnp.dot(x_ref[...], w_ref[...],
                            preferred_element_type=jnp.float32)

    @pl.when(k == pl.num_programs(2) - 1)
    def _():
        y = acc_ref[...] + b_ref[...].astype(jnp.float32)
        if activation is not None:
            y = activation(y)
        o_ref[...] = y.astype(o_ref.dtype)


# ---------------------------------------------------------------------------
# Helpers
# ---------------------------------------------------------------------------
def _round_up(v, m):
    return ((v + m - 1) // m) * m


def _pick_tile(extent, candidates):
    for c in candidates:
        if extent % c == 0:
            return c
    return candidates[-1]


def _vmem_limit_bytes():
    """~75% of physical VMEM (v5e/v6e: 128 MiB, v7x: 64 MiB/TC), capped at 100 MiB."""
    try:
        cap = int(getattr(pltpu.get_tpu_info(), "vmem_capacity_bytes", 0))
    except Exception:
        cap = 0
    if cap <= 0:
        cap = 64 * 1024 * 1024  # conservative default (v7x per-TC physical VMEM)
    return int(min(0.75 * cap, 100 * 1024 * 1024))


def _tile_footprint_bytes(tm, tn, tk, in_bytes, out_bytes):
    foot = 2 * (tm * tk + tk * tn + tn) * in_bytes   # double-buffered inputs + bias
    foot += 2 * tm * tn * out_bytes                  # double-buffered output tile
    foot += tm * tn * 4                              # f32 accumulator (worst case)
    return foot


# ---------------------------------------------------------------------------
# Public wrapper
# ---------------------------------------------------------------------------
def inherited_fc_layer(x, weights, bias, *, activation=None,
                       compute_dtype=None, force_pallas=False):
    """Pallas TPU implementation of inheritedFCLayer.forward.

    y = bias + x @ weights, then optional `activation` callable
    (Activation.IDENTITY in the torch module -> activation=None here).

    x: (M, K), weights: (K, N), bias: (N,) or (1, N).
    compute_dtype: optionally cast x/weights (e.g. jnp.bfloat16) to reach MXU
      peak on v6e/v7x; accumulation and the bias add stay in f32.
    """
    M, K = x.shape
    Kw, N = weights.shape
    assert K == Kw, "in_features mismatch between x and weights"
    out_dtype = jnp.result_type(x.dtype, weights.dtype, bias.dtype)
    bias2d = jnp.reshape(bias, (1, N))

    # --- tiny-problem bypass: a Pallas call is pure fixed overhead here --------
    nbytes = (M * K + K * N + M * N) * jnp.dtype(out_dtype).itemsize
    if not force_pallas and nbytes < 256 * 1024:
        y = bias2d + jnp.dot(x, weights)
        if activation is not None:
            y = activation(y)
        return y.astype(out_dtype)

    # --- pad to MXU/lane-friendly extents (lane-dense output, no masked stores) -
    in_dtype = jnp.dtype(compute_dtype) if compute_dtype is not None else x.dtype
    Mp = _round_up(M, 8)
    Kp = _round_up(K, 128)
    Np = _round_up(N, 128)
    xp = x.astype(in_dtype)
    wp = weights.astype(in_dtype)
    if (Mp, Kp) != (M, K):
        xp = jnp.pad(xp, ((0, Mp - M), (0, Kp - K)))
    if (Kp, Np) != (K, N):
        wp = jnp.pad(wp, ((0, Kp - K), (0, Np - N)))
    bp = bias2d if Np == N else jnp.pad(bias2d, ((0, 0), (0, Np - N)))

    # --- VMEM-budgeted, MXU-aligned tile selection ------------------------------
    vmem_limit = _vmem_limit_bytes()
    tile_budget = int(0.85 * vmem_limit)
    in_bytes = jnp.dtype(in_dtype).itemsize
    out_bytes = jnp.dtype(out_dtype).itemsize

    tm_cands = [256, 128, 64, 32, 16, 8]      # Mp is a multiple of 8
    tn_cands = [512, 384, 256, 128]           # Np is a multiple of 128 (lane-dense)
    tk_cands = [1024, 512, 256, 128]          # Kp is a multiple of 128
    tm = _pick_tile(Mp, tm_cands)
    tn = _pick_tile(Np, tn_cands)
    tk = _pick_tile(Kp, tk_cands)

    def fits(a, b, c):
        return _tile_footprint_bytes(a, b, c, in_bytes, out_bytes) <= tile_budget

    while not fits(tm, tn, tk) and tk > 128:
        tk_cands = [c for c in tk_cands if c < tk]
        tk = _pick_tile(Kp, tk_cands)
    while not fits(tm, tn, tk) and tn > 128:
        tn_cands = [c for c in tn_cands if c < tn]
        tn = _pick_tile(Np, tn_cands)
    while not fits(tm, tn, tk) and tm > 8:
        tm_cands = [c for c in tm_cands if c < tm]
        tm = _pick_tile(Mp, tm_cands)

    # Give v7x's two TensorCores >= 2 tiles on a "parallel" axis when possible.
    if (Mp // tm) * (Np // tn) == 1:
        if tn >= 256 and (tn // 2) % 128 == 0:
            tn //= 2
        elif tm >= 16:
            tm //= 2

    kt = Kp // tk

    if kt == 1:
        # Fast path: no K split -> no accumulator scratch, 2-D grid.
        kernel = functools.partial(_fc_kernel_single_k, activation=activation)
        grid = (Mp // tm, Np // tn)
        in_specs = [
            pl.BlockSpec((tm, Kp), lambda i, j: (i, 0)),   # x tile (full K)
            pl.BlockSpec((Kp, tn), lambda i, j: (0, j)),   # weights tile (full K)
            pl.BlockSpec((1, tn), lambda i, j: (0, j)),    # bias tile
        ]
        out_specs = pl.BlockSpec((tm, tn), lambda i, j: (i, j))
        scratch_shapes = []
        dim_sem = ("parallel", "parallel")
    else:
        # Reduction axis last ('arbitrary'); output tile resident across it.
        kernel = functools.partial(_fc_kernel_multi_k, activation=activation)
        grid = (Mp // tm, Np // tn, kt)
        in_specs = [
            pl.BlockSpec((tm, tk), lambda i, j, k: (i, k)),   # x tile
            pl.BlockSpec((tk, tn), lambda i, j, k: (k, j)),   # weights tile
            pl.BlockSpec((1, tn), lambda i, j, k: (0, j)),    # bias tile
        ]
        out_specs = pl.BlockSpec((tm, tn), lambda i, j, k: (i, j))
        scratch_shapes = [pltpu.VMEM((tm, tn), jnp.float32)]
        dim_sem = ("parallel", "parallel", "arbitrary")

    y_padded = pl.pallas_call(
        kernel,
        out_shape=jax.ShapeDtypeStruct((Mp, Np), out_dtype),
        grid_spec=pltpu.PrefetchScalarGridSpec(
            num_scalar_prefetch=0,
            grid=grid,
            in_specs=in_specs,
            out_specs=out_specs,
            scratch_shapes=scratch_shapes,
        ),
        compiler_params=pltpu.CompilerParams(
            dimension_semantics=dim_sem,
            vmem_limit_bytes=vmem_limit,
        ),
    )(xp, wp, bp)

    # TODO(synk): Activation enum -> callable mapping (get_activation_fn) lives in
    # modulusDL; here any JAX-traceable callable is accepted via `activation`.
    return y_padded[:M, :N]


# ---------------------------------------------------------------------------
# Demo / self-test
# ---------------------------------------------------------------------------
if __name__ == "__main__":
    key = jax.random.PRNGKey(0)
    kx, kw, kb = jax.random.split(key, 3)

    # Case 1: small but realistic FC layer — exercises the tiled multi-K path
    # (batch=256, in_features=384, out_features=512).
    M, K, N = 256, 384, 512
    x = jax.random.normal(kx, (M, K), dtype=jnp.float32)
    weights = jax.random.normal(kw, (K, N), dtype=jnp.float32) * 0.05
    bias = jax.random.normal(kb, (N,), dtype=jnp.float32) * 0.1

    y = jax.block_until_ready(inherited_fc_layer(x, weights, bias, activation=None))
    y_ref = bias[None, :] + jnp.dot(x, weights, precision=jax.lax.Precision.HIGHEST)
    assert y.shape == (M, N)
    assert jnp.allclose(y, y_ref, atol=2e-2, rtol=2e-2), "case 1 mismatch"

    # Case 2: tiny module-default-ish shapes, forced through the Pallas path
    # (tests padding to lane-dense tiles + the single-K fast path).
    M2, K2, N2 = 16, 32, 64
    x2 = jax.random.normal(kx, (M2, K2), dtype=jnp.float32)
    w2 = jax.random.normal(kw, (K2, N2), dtype=jnp.float32) * 0.1
    b2 = jax.random.normal(kb, (N2,), dtype=jnp.float32) * 0.1
    y2 = jax.block_until_ready(
        inherited_fc_layer(x2, w2, b2, activation=None, force_pallas=True))
    y2_ref = b2[None, :] + x2 @ w2
    assert y2.shape == (M2, N2)
    assert jnp.allclose(y2, y2_ref, atol=1e-4, rtol=1e-4), "case 2 mismatch"

    print("KERNEL_OK")
</pallas_src>

<mosaic_0001>
module attributes {stable_mosaic.version = 11 : i64} {
  func.func @_fc_kernel_multi_k(%arg0: i32, %arg1: i32, %arg2: i32, %arg3: memref<256x128xf32, #tpu.memory_space<vmem>>, %arg4: memref<128x256xf32, #tpu.memory_space<vmem>>, %arg5: memref<1x256xf32, #tpu.memory_space<vmem>>, %arg6: memref<256x256xf32, #tpu.memory_space<vmem>>, %arg7: memref<256x256xf32, #tpu.memory_space<vmem>>) attributes {dimension_semantics = [#tpu.dimension_semantics<parallel>, #tpu.dimension_semantics<parallel>, #tpu.dimension_semantics<arbitrary>], iteration_bounds = array<i64: 1, 2, 3>, scalar_prefetch = 0 : i64, scratch_operands = 1 : i64, tpu.core_type = #tpu.core_type<tc>, window_params = [{transform_indices = @transform_0, window_bounds = array<i64: 256, 128>}, {transform_indices = @transform_1, window_bounds = array<i64: 128, 256>}, {transform_indices = @transform_2, window_bounds = array<i64: 1, 256>}, {transform_indices = @transform_3, window_bounds = array<i64: 256, 256>}]} {
    %c0_i32 = arith.constant 0 : i32
    %0 = arith.cmpi eq, %arg2, %c0_i32 : i32
    %1 = arith.extui %0 : i1 to i32
    %c0_i32_0 = arith.constant 0 : i32
    %2 = arith.cmpi ne, %1, %c0_i32_0 : i32
    scf.if %2 {
      %cst_9 = arith.constant 0.000000e+00 : f32
      %12 = vector.broadcast %cst_9 : f32 to vector<256x256xf32>
      %c0_10 = arith.constant 0 : index
      %c0_11 = arith.constant 0 : index
      %13 = vector.load %arg7[%c0_10, %c0_11] : memref<256x256xf32, #tpu.memory_space<vmem>>, vector<256x256xf32>
      tpu.vector_store %arg7[%c0_10, %c0_11], %12 {strides = array<i32>} : memref<256x256xf32, #tpu.memory_space<vmem>>, vector<256x256xf32>,
    } else {
    }
    %c0 = arith.constant 0 : index
    %c0_1 = arith.constant 0 : index
    %3 = vector.load %arg7[%c0, %c0_1] : memref<256x256xf32, #tpu.memory_space<vmem>>, vector<256x256xf32>
    %c0_2 = arith.constant 0 : index
    %c0_3 = arith.constant 0 : index
    %4 = vector.load %arg3[%c0_2, %c0_3] : memref<256x128xf32, #tpu.memory_space<vmem>>, vector<256x128xf32>
    %c0_4 = arith.constant 0 : index
    %c0_5 = arith.constant 0 : index
    %5 = vector.load %arg4[%c0_4, %c0_5] : memref<128x256xf32, #tpu.memory_space<vmem>>, vector<128x256xf32>
    %cst = arith.constant dense<0.000000e+00> : vector<256x256xf32>
    %6 = tpu.matmul %4, %5, %cst {dimension_numbers = #tpu.dot_dimension_numbers<[1], [0], [0], [1], [0, 0, 1, 1], [], []>} : vector<256x128xf32>, vector<128x256xf32>, vector<256x256xf32> -> vector<256x256xf32>
    %7 = arith.addf %3, %6 : vector<256x256xf32>
    %c0_6 = arith.constant 0 : index
    %c0_7 = arith.constant 0 : index
    %8 = vector.load %arg7[%c0_6, %c0_7] : memref<256x256xf32, #tpu.memory_space<vmem>>, vector<256x256xf32>
    tpu.vector_store %arg7[%c0_6, %c0_7], %7 {strides = array<i32>} : memref<256x256xf32, #tpu.memory_space<vmem>>, vector<256x256xf32>,
    %c2_i32 = arith.constant 2 : i32
    %9 = arith.cmpi eq, %arg2, %c2_i32 : i32
    %10 = arith.extui %9 : i1 to i32
    %c0_i32_8 = arith.constant 0 : i32
    %11 = arith.cmpi ne, %10, %c0_i32_8 : i32
    scf.if %11 {
      %c0_9 = arith.constant 0 : index
      %c0_10 = arith.constant 0 : index
      %12 = vector.load %arg7[%c0_9, %c0_10] : memref<256x256xf32, #tpu.memory_space<vmem>>, vector<256x256xf32>
      %c0_11 = arith.constant 0 : index
      %c0_12 = arith.constant 0 : index
      %13 = vector.load %arg5[%c0_11, %c0_12] : memref<1x256xf32, #tpu.memory_space<vmem>>, vector<1x256xf32>
      %14 = vector.broadcast %13 : vector<1x256xf32> to vector<256x256xf32>
      %15 = arith.addf %12, %14 : vector<256x256xf32>
      %c0_13 = arith.constant 0 : index
      %c0_14 = arith.constant 0 : index
      %16 = vector.load %arg6[%c0_13, %c0_14] : memref<256x256xf32, #tpu.memory_space<vmem>>, vector<256x256xf32>
      tpu.vector_store %arg6[%c0_13, %c0_14], %15 {strides = array<i32>} : memref<256x256xf32, #tpu.memory_space<vmem>>, vector<256x256xf32>,
    } else {
    }
    return
  }
  func.func @transform_0(%arg0: i32, %arg1: i32, %arg2: i32) -> (i32, i32) {
    %c0_i32 = arith.constant 0 : i32
    return %arg0, %arg2 : i32, i32
  }
  func.func @transform_1(%arg0: i32, %arg1: i32, %arg2: i32) -> (i32, i32) {
    %c0_i32 = arith.constant 0 : i32
    return %arg2, %arg1 : i32, i32
  }
  func.func @transform_2(%arg0: i32, %arg1: i32, %arg2: i32) -> (i32, i32) {
    %c0_i32 = arith.constant 0 : i32
    %c0_i32_0 = arith.constant 0 : i32
    return %c0_i32, %arg1 : i32, i32
  }
  func.func @transform_3(%arg0: i32, %arg1: i32, %arg2: i32) -> (i32, i32) {
    %c0_i32 = arith.constant 0 : i32
    return %arg0, %arg1 : i32, i32
  }
}

</mosaic_0001>

<llo_original>
// kernel: tpu_custom_call.1
$region0: #{tpu_custom_call.1}
  #allocation0 [shape = 'u32[]', space=smem, size = 0x4, offset = 0x4, fixed_abs, tag = 'smem constant byte address 0x4 - core index']
  #allocation1 [shape = 'u32[144,128]{1,0:T(1,128)}', space=vmem, size = 0x12000, scoped, tag = 'internal scratch']
  #allocation2 [shape = 'f32[256,256]{1,0:T(8,128)}', space=vmem, size = 0x40000, scoped, tag = 'scratch operand']
  %s0 = inlined_call_operand.hbm [shape: f32[256,384], index: 0, kind: input, shape index: {}]
  %s1 = inlined_call_operand.hbm [shape: f32[384,512], index: 1, kind: input, shape index: {}]
  %s2 = inlined_call_operand.vmem [shape: f32[1,512], index: 2, kind: input, shape index: {}]
  %s3 = inlined_call_operand.hbm [shape: f32[256,512], index: 3, kind: output, shape index: {}]
  %s4 = sld [smem:[#allocation0]]
  $region61: #{tpu_custom_call.1} parent=0
    _
  %s6 = ssub.s32 1, %s4
  %s7 = scalar_select 0, %s6, %s4
  $region1: #{tpu_custom_call.1} parent=0
    #allocation3 [shape = 'u8[262144]{0}', space=vmem, size = 0x40000, scoped, tag = 'input window, operand 0']
    #allocation4 [shape = 's32[2]{0}', space=sflag, size = 0x8, scoped, tag = 'scoped memory for tpu_custom_call.1']
    #allocation5 [shape = 's32[2]{0}', space=sflag, size = 0x8, scoped, tag = 'scoped memory for tpu_custom_call.1']
    #allocation6 [shape = 'u8[262144]{0}', space=vmem, size = 0x40000, scoped, tag = 'input window, operand 1']
    #allocation7 [shape = 's32[2]{0}', space=sflag, size = 0x8, scoped, tag = 'scoped memory for tpu_custom_call.1']
    #allocation8 [shape = 'u8[524288]{0}', space=vmem, size = 0x80000, scoped, tag = 'output window, operand 0']
    %8 = vsyncpa [#allocation4], 0
    %s9 = scalar_lea.sflag [#allocation4], 1
    %10 = vsyncpa %s9, 0
    %11 = vsyncpa [#allocation7], 0
    %s12 = scalar_lea.sflag [#allocation7], 1
    %13 = vsyncpa %s12, 0
    %14 = vsyncpa [#allocation5], 0
    %s15 = scalar_lea.sflag [#allocation5], 1
    %16 = vsyncpa %s15, 0
    loop: start=0, step=1, limit=8
    $region2: #{tpu_custom_call.1} parent=1 // loop_pre_header
      _
    $region3: #{tpu_custom_call.1} parent=1 // loop_header
      %s18 = sphi 0, %s22
      %p19 = scmp.ge.s32.totalorder %s18, 8
      %s25 = sphi 0, %s44
      %s26 = sphi 0, %s40
      %s27 = sphi 0, %s36
      %s28 = sphi 0, %s25
      %s29 = sphi 0, %s26
      %s30 = sphi 0, %s27
      %s31 = sphi 0, %s28
      %s32 = sphi 0, %s29
      %s33 = sphi 0, %s30
      %s49 = sphi 0, %s51
      %s52 = sphi 0, %s49
      %s53 = sphi 0, %s52
      %s69 = sphi 0, %s53
      %s77 = sphi 0, %s79
      %s80 = sphi 0, %s77
      %s81 = sphi 0, %s80
      %s97 = sphi 0, %s81
      %s103 = sphi 0, %s105
      %s106 = sphi 0, %s103
      %s107 = sphi 0, %s106
      %s123 = sphi 0, %s107
      %s131 = sphi 0, %s133
      %s134 = sphi 0, %s131
      %s135 = sphi 0, %s134
      %s151 = sphi 0, %s135
    $region4: #{tpu_custom_call.1} parent=1 // loop_header_branch
      %21 = sbr.rel (%p19) target = $region8
    $region5: #{tpu_custom_call.1} parent=1 // loop_body
      %s23 = ssub.s32 %s18, 1
      %s24 = ssub.s32 %s18, 2
      %s34 = sadd.s32 1, %s27
      %p35 = scmp.ge.s32.totalorder %s34, 3
      %s36 = scalar_select %p35, 0, %s34
      %s37 = sadd.s32 1, %s26
      %s38 = scalar_select %p35, %s37, %s26
      %p39 = scmp.ge.s32.totalorder %s38, 2
      %s40 = scalar_select %p39, 0, %s38
      %s41 = sadd.s32 1, %s25
      %s42 = scalar_select %p39, %s41, %s25
      %p43 = scmp.ge.s32.totalorder %s42, 1
      %s44 = scalar_select %p43, 0, %s42
      %s45 = ssub.s32 %s25, %s44
      %s46 = ssub.s32 %s27, %s36
      %s47 = sor.u32 %s45, %s46
      %p48 = scmp.eq.s32.totalorder %s47, 0
      %s50 = sadd.s32 %s49, 1
      %s51 = scalar_select %p48, %s49, %s50
      %p54 = pneg %p48
      %p55 = scmp.eq.s32.totalorder %s18, 5
      %p56 = por %p54, %p55
      %p57 = scmp.ne.s32.totalorder %s49, %s52
      %p58 = scmp.eq.s32.totalorder %s18, 0
      %p59 = por %p57, %p58
      %p60 = scmp.ne.s32.totalorder %s49, %s52
      %p61 = scmp.eq.s32.totalorder %s23, 5
      %p62 = por %p60, %p61
      %p63 = scmp.ne.s32.totalorder %s52, %s53
      %p64 = scmp.eq.s32.totalorder %s23, 0
      %p65 = por %p63, %p64
      %p66 = scmp.ne.s32.totalorder %s52, %s53
      %p67 = scmp.eq.s32.totalorder %s24, 5
      %p68 = por %p66, %p67
      %p70 = scmp.ne.s32.totalorder %s53, %s69
      %p71 = scmp.eq.s32.totalorder %s24, 0
      %p72 = por %p70, %p71
      %s73 = ssub.s32 %s27, %s36
      %s74 = ssub.s32 %s26, %s40
      %s75 = sor.u32 %s73, %s74
      %p76 = scmp.eq.s32.totalorder %s75, 0
      %s78 = sadd.s32 %s77, 1
      %s79 = scalar_select %p76, %s77, %s78
      %p82 = pneg %p76
      %p83 = scmp.eq.s32.totalorder %s18, 5
      %p84 = por %p82, %p83
      %p85 = scmp.ne.s32.totalorder %s77, %s80
      %p86 = scmp.eq.s32.totalorder %s18, 0
      %p87 = por %p85, %p86
      %p88 = scmp.ne.s32.totalorder %s77, %s80
      %p89 = scmp.eq.s32.totalorder %s23, 5
      %p90 = por %p88, %p89
      %p91 = scmp.ne.s32.totalorder %s80, %s81
      %p92 = scmp.eq.s32.totalorder %s23, 0
      %p93 = por %p91, %p92
      %p94 = scmp.ne.s32.totalorder %s80, %s81
      %p95 = scmp.eq.s32.totalorder %s24, 5
      %p96 = por %p94, %p95
      %p98 = scmp.ne.s32.totalorder %s81, %s97
      %p99 = scmp.eq.s32.totalorder %s24, 0
      %p100 = por %p98, %p99
      %s101 = ssub.s32 %s26, %s40
      %p102 = scmp.eq.s32.totalorder %s101, 0
      %s104 = sadd.s32 %s103, 1
      %s105 = scalar_select %p102, %s103, %s104
      %p108 = pneg %p102
      %p109 = scmp.eq.s32.totalorder %s18, 5
      %p110 = por %p108, %p109
      %p111 = scmp.ne.s32.totalorder %s103, %s106
      %p112 = scmp.eq.s32.totalorder %s18, 0
      %p113 = por %p111, %p112
      %p114 = scmp.ne.s32.totalorder %s103, %s106
      %p115 = scmp.eq.s32.totalorder %s23, 5
      %p116 = por %p114, %p115
      %p117 = scmp.ne.s32.totalorder %s106, %s107
      %p118 = scmp.eq.s32.totalorder %s23, 0
      %p119 = por %p117, %p118
      %p120 = scmp.ne.s32.totalorder %s106, %s107
      %p121 = scmp.eq.s32.totalorder %s24, 5
      %p122 = por %p120, %p121
      %p124 = scmp.ne.s32.totalorder %s107, %s123
      %p125 = scmp.eq.s32.totalorder %s24, 0
      %p126 = por %p124, %p125
      %s127 = ssub.s32 %s25, %s44
      %s128 = ssub.s32 %s26, %s40
      %s129 = sor.u32 %s127, %s128
      %p130 = scmp.eq.s32.totalorder %s129, 0
      %s132 = sadd.s32 %s131, 1
      %s133 = scalar_select %p130, %s131, %s132
      %p136 = pneg %p130
      %p137 = scmp.eq.s32.totalorder %s18, 5
      %p138 = por %p136, %p137
      %p139 = scmp.ne.s32.totalorder %s131, %s134
      %p140 = scmp.eq.s32.totalorder %s18, 0
      %p141 = por %p139, %p140
      %p142 = scmp.ne.s32.totalorder %s131, %s134
      %p143 = scmp.eq.s32.totalorder %s23, 5
      %p144 = por %p142, %p143
      %p145 = scmp.ne.s32.totalorder %s134, %s135
      %p146 = scmp.eq.s32.totalorder %s23, 0
      %p147 = por %p145, %p146
      %p148 = scmp.ne.s32.totalorder %s134, %s135
      %p149 = scmp.eq.s32.totalorder %s24, 5
      %p150 = por %p148, %p149
      %p152 = scmp.ne.s32.totalorder %s135, %s151
      %p153 = scmp.eq.s32.totalorder %s24, 0
      %p154 = por %p152, %p153
      %p155 = scmp.le.s32.totalorder 1, %s18
      %p156 = scmp.lt.s32.totalorder %s18, 7
      %p157 = pnand %p155, %p156
      %p158 = pneg %p157
      // Predicated region
      $region9: #{tpu_custom_call.1} parent=5 // pred_check
        _
      $region10: #{tpu_custom_call.1} parent=5 // pred_check_branch
        %160 = sbr.rel (%p157) target = $region12
      $region11: #{tpu_custom_call.1} parent=5 // pred_region
        %s161 = ssub.s32 %s18, 1
      $region12: #{tpu_custom_call.1} parent=5 // pred_fallthru
        _
      %p162 = scmp.lt.s32.totalorder %s18, 6
      // Predicated region
      $region13: #{tpu_custom_call.1} parent=5 // pred_check
        %p163 = pneg %p162
      $region14: #{tpu_custom_call.1} parent=5 // pred_check_branch
        %165 = sbr.rel (%p163) target = $region16
      $region15: #{tpu_custom_call.1} parent=5 // pred_region
        // Predicated region
        $region17: #{tpu_custom_call.1} parent=15 // pred_check
          %p166 = pneg %p59
        $region18: #{tpu_custom_call.1} parent=15 // pred_check_branch
          %168 = sbr.rel (%p166) target = $region20
        $region19: #{tpu_custom_call.1} parent=15 // pred_region
          %s169 = sand.u32 %s49, 1
          %s170 = scalar_lea.sflag [#allocation4], %s169
          %s171 = sand.u32 %s49, 1
          %s172 = smul.addr %s171, 256
          %s173 = scalar_lea.vmem [#allocation3], %s172
          %s174 = smul.u32 32, %s25
          %s176 = ssub.s32 4096, 4096
          %177 = vsyncadd %s170, %s176
          %s178 = smul.addr %s174, 3
          %s179 = sadd.s32 %s27, %s178
          %s180 = smul.addr %s179, 128
          %s181 = scalar_lea.hbm %s0, %s180
          %s182 = sshll.u32 %s173, 4
          %s183 = int_to_ptr.vmem [resolvable:$true] %s182
          %188 = dma.hbm_to_vmem [thread:$0]  %s181, 4096, %s183, %s170, 384, 128, 8
        $region20: #{tpu_custom_call.1} parent=15 // pred_fallthru
          _
        // Predicated region
        $region21: #{tpu_custom_call.1} parent=15 // pred_check
          %p189 = pneg %p87
        $region22: #{tpu_custom_call.1} parent=15 // pred_check_branch
          %191 = sbr.rel (%p189) target = $region24
        $region23: #{tpu_custom_call.1} parent=15 // pred_region
          %s192 = sand.u32 %s77, 1
          %s193 = scalar_lea.sflag [#allocation7], %s192
          %s194 = sand.u32 %s77, 1
          %s195 = smul.addr %s194, 256
          %s196 = scalar_lea.vmem [#allocation6], %s195
          %s197 = smul.u32 16, %s27
          %s198 = smul.u32 2, %s26
          %s200 = ssub.s32 4096, 4096
          %201 = vsyncadd %s193, %s200
          %s202 = smul.addr %s197, 4
          %s203 = sadd.s32 %s198, %s202
          %s204 = smul.addr %s203, 128
          %s205 = scalar_lea.hbm %s1, %s204
          %s206 = sshll.u32 %s196, 4
          %s207 = int_to_ptr.vmem [resolvable:$true] %s206
          %212 = dma.hbm_to_vmem [thread:$0]  %s205, 4096, %s207, %s193, 512, 256, 16
        $region24: #{tpu_custom_call.1} parent=15 // pred_fallthru
          _
        // Predicated region
        $region25: #{tpu_custom_call.1} parent=15 // pred_check
          %p213 = pneg %p113
        $region26: #{tpu_custom_call.1} parent=15 // pred_check_branch
          %215 = sbr.rel (%p213) target = $region28
        $region27: #{tpu_custom_call.1} parent=15 // pred_region
          %s216 = smul.u32 2, %s26
          %p217 = scmp.lt.s32.totalorder %s216, 3
          %s218 = scalar_select %p217, %s216, 3
          %s219 = scalar_lea.vmem %s2, %s218
          %s220 = smul.u32 2, %s26
        $region28: #{tpu_custom_call.1} parent=15 // pred_fallthru
          _
      $region16: #{tpu_custom_call.1} parent=5 // pred_fallthru
        _
      %p221 = scmp.le.s32.totalorder 1, %s18
      %p222 = scmp.lt.s32.totalorder %s18, 7
      %p223 = pnand %p221, %p222
      %p224 = pneg %p223
      // Predicated region
      $region29: #{tpu_custom_call.1} parent=5 // pred_check
        _
      $region30: #{tpu_custom_call.1} parent=5 // pred_check_branch
        %226 = sbr.rel (%p223) target = $region32
      $region31: #{tpu_custom_call.1} parent=5 // pred_region
        %s227 = ssub.s32 %s18, 1
        %s228 = sand.u32 %s52, 1
        %s229 = scalar_lea.sflag [#allocation4], %s228
        %s230 = sand.u32 %s52, 1
        %s231 = smul.addr %s230, 256
        %s232 = scalar_lea.vmem [#allocation3], %s231
        // Predicated region
        $region33: #{tpu_custom_call.1} parent=31 // pred_check
          %p233 = pneg %p65
        $region34: #{tpu_custom_call.1} parent=31 // pred_check_branch
          %235 = sbr.rel (%p233) target = $region36
        $region35: #{tpu_custom_call.1} parent=31 // pred_region
          %236 = dma.done %s229, 4096
        $region36: #{tpu_custom_call.1} parent=31 // pred_fallthru
          _
        %s237 = sand.u32 %s80, 1
        %s238 = scalar_lea.sflag [#allocation7], %s237
        %s239 = sand.u32 %s80, 1
        %s240 = smul.addr %s239, 256
        %s241 = scalar_lea.vmem [#allocation6], %s240
        // Predicated region
        $region37: #{tpu_custom_call.1} parent=31 // pred_check
          %p242 = pneg %p93
        $region38: #{tpu_custom_call.1} parent=31 // pred_check_branch
          %244 = sbr.rel (%p242) target = $region40
        $region39: #{tpu_custom_call.1} parent=31 // pred_region
          %245 = dma.done %s238, 4096
        $region40: #{tpu_custom_call.1} parent=31 // pred_fallthru
          _
        %s246 = sand.u32 %s52, 1
        %s247 = scalar_lea.sflag [#allocation4], %s246
        %s248 = sand.u32 %s52, 1
        %s249 = smul.addr %s248, 256
        %s250 = scalar_lea.vmem [#allocation3], %s249
        %p251 = pneg %p65
        %p252 = pneg %p62
        %s253 = sand.u32 %s80, 1
        %s254 = scalar_lea.sflag [#allocation7], %s253
        %s255 = sand.u32 %s80, 1
        %s256 = smul.addr %s255, 256
        %s257 = scalar_lea.vmem [#allocation6], %s256
        %p258 = pneg %p93
        %p259 = pneg %p90
        %s260 = smul.u32 2, %s29
        %p261 = scmp.lt.s32.totalorder %s260, 3
        %s262 = scalar_select %p261, %s260, 3
        %s263 = scalar_lea.vmem %s2, %s262
        %p264 = pneg %p119
        %p265 = pneg %p116
        %p266 = pneg %p147
        %p267 = pneg %p144
        %s268 = sand.u32 %s134, 1
        %s269 = scalar_lea.sflag [#allocation5], %s268
        %s270 = sand.u32 %s134, 1
        %s271 = smul.addr %s270, 512
        %s272 = scalar_lea.vmem [#allocation8], %s271
        %s273 = smul.u32 32, %s28
        %s274 = smul.u32 16, %s30
        %s275 = smul.u32 2, %s29
        %s276 = smul.u32 2, %s29
        %p277 = scmp.lt.s32.totalorder %s276, 3
        %s278 = scalar_select %p277, %s276, 3
        %s279 = scalar_lea.vmem %s2, %s278
        %s280 = smul.u32 2, %s29
        %s281 = smul.u32 32, %s28
        %s282 = smul.u32 2, %s29
        %p283 = scmp.eq.s32.totalorder %s30, 0
        // Predicated region
        $region41: #{tpu_custom_call.1} parent=31 // pred_check
          %p284 = pneg %p283
        $region42: #{tpu_custom_call.1} parent=31 // pred_check_branch
          %286 = sbr.rel (%p284) target = $region44
        $region43: #{tpu_custom_call.1} parent=31 // pred_region
          %287 = vst [vmem:[#allocation2] sm:$0xff] 0.0
          %288 = vst [vmem:[#allocation2 + $0x8] sm:$0xff] 0.0
          %289 = vst [vmem:[#allocation2 + $0x10] sm:$0xff] 0.0
          %290 = vst [vmem:[#allocation2 + $0x18] sm:$0xff] 0.0
          %291 = vst [vmem:[#allocation2 + $0x20] sm:$0xff] 0.0
          %292 = vst [vmem:[#allocation2 + $0x28] sm:$0xff] 0.0
          %293 = vst [vmem:[#allocation2 + $0x30] sm:$0xff] 0.0
          %294 = vst [vmem:[#allocation2 + $0x38] sm:$0xff] 0.0
          %295 = vst [vmem:[#allocation2 + $0x40] sm:$0xff] 0.0
          %296 = vst [vmem:[#allocation2 + $0x48] sm:$0xff] 0.0
          %297 = vst [vmem:[#allocation2 + $0x50] sm:$0xff] 0.0
          %298 = vst [vmem:[#allocation2 + $0x58] sm:$0xff] 0.0
          %299 = vst [vmem:[#allocation2 + $0x60] sm:$0xff] 0.0
          %300 = vst [vmem:[#allocation2 + $0x68] sm:$0xff] 0.0
          %301 = vst [vmem:[#allocation2 + $0x70] sm:$0xff] 0.0
          %302 = vst [vmem:[#allocation2 + $0x78] sm:$0xff] 0.0
          %303 = vst [vmem:[#allocation2 + $0x80] sm:$0xff] 0.0
          %304 = vst [vmem:[#allocation2 + $0x88] sm:$0xff] 0.0
          %305 = vst [vmem:[#allocation2 + $0x90] sm:$0xff] 0.0
          %306 = vst [vmem:[#allocation2 + $0x98] sm:$0xff] 0.0
          %307 = vst [vmem:[#allocation2 + $0xa0] sm:$0xff] 0.0
          %308 = vst [vmem:[#allocation2 + $0xa8] sm:$0xff] 0.0
          %309 = vst [vmem:[#allocation2 + $0xb0] sm:$0xff] 0.0
          %310 = vst [vmem:[#allocation2 + $0xb8] sm:$0xff] 0.0
          %311 = vst [vmem:[#allocation2 + $0xc0] sm:$0xff] 0.0
          %312 = vst [vmem:[#allocation2 + $0xc8] sm:$0xff] 0.0
          %313 = vst [vmem:[#allocation2 + $0xd0] sm:$0xff] 0.0
          %314 = vst [vmem:[#allocation2 + $0xd8] sm:$0xff] 0.0
          %315 = vst [vmem:[#allocation2 + $0xe0] sm:$0xff] 0.0
          %316 = vst [vmem:[#allocation2 + $0xe8] sm:$0xff] 0.0
          %317 = vst [vmem:[#allocation2 + $0xf0] sm:$0xff] 0.0
          %318 = vst [vmem:[#allocation2 + $0xf8] sm:$0xff] 0.0
          %319 = vst [vmem:[#allocation2 + $0x100] sm:$0xff] 0.0
          %320 = vst [vmem:[#allocation2 + $0x108] sm:$0xff] 0.0
          %321 = vst [vmem:[#allocation2 + $0x110] sm:$0xff] 0.0
          %322 = vst [vmem:[#allocation2 + $0x118] sm:$0xff] 0.0
          %323 = vst [vmem:[#allocation2 + $0x120] sm:$0xff] 0.0
          %324 = vst [vmem:[#allocation2 + $0x128] sm:$0xff] 0.0
          %325 = vst [vmem:[#allocation2 + $0x130] sm:$0xff] 0.0
          %326 = vst [vmem:[#allocation2 + $0x138] sm:$0xff] 0.0
          %327 = vst [vmem:[#allocation2 + $0x140] sm:$0xff] 0.0
          %328 = vst [vmem:[#allocation2 + $0x148] sm:$0xff] 0.0
          %329 = vst [vmem:[#allocation2 + $0x150] sm:$0xff] 0.0
          %330 = vst [vmem:[#allocation2 + $0x158] sm:$0xff] 0.0
          %331 = vst [vmem:[#allocation2 + $0x160] sm:$0xff] 0.0
          %332 = vst [vmem:[#allocation2 + $0x168] sm:$0xff] 0.0
          %333 = vst [vmem:[#allocation2 + $0x170] sm:$0xff] 0.0
          %334 = vst [vmem:[#allocation2 + $0x178] sm:$0xff] 0.0
          %335 = vst [vmem:[#allocation2 + $0x180] sm:$0xff] 0.0
          %336 = vst [vmem:[#allocation2 + $0x188] sm:$0xff] 0.0
          %337 = vst [vmem:[#allocation2 + $0x190] sm:$0xff] 0.0
          %338 = vst [vmem:[#allocation2 + $0x198] sm:$0xff] 0.0
          %339 = vst [vmem:[#allocation2 + $0x1a0] sm:$0xff] 0.0
          %340 = vst [vmem:[#allocation2 + $0x1a8] sm:$0xff] 0.0
          %341 = vst [vmem:[#allocation2 + $0x1b0] sm:$0xff] 0.0
          %342 = vst [vmem:[#allocation2 + $0x1b8] sm:$0xff] 0.0
          %343 = vst [vmem:[#allocation2 + $0x1c0] sm:$0xff] 0.0
          %344 = vst [vmem:[#allocation2 + $0x1c8] sm:$0xff] 0.0
          %345 = vst [vmem:[#allocation2 + $0x1d0] sm:$0xff] 0.0
          %346 = vst [vmem:[#allocation2 + $0x1d8] sm:$0xff] 0.0
          %347 = vst [vmem:[#allocation2 + $0x1e0] sm:$0xff] 0.0
          %348 = vst [vmem:[#allocation2 + $0x1e8] sm:$0xff] 0.0
          %349 = vst [vmem:[#allocation2 + $0x1f0] sm:$0xff] 0.0
          %350 = vst [vmem:[#allocation2 + $0x1f8] sm:$0xff] 0.0
        $region44: #{tpu_custom_call.1} parent=31 // pred_fallthru
          _
        %v351 = vld [vmem:[#allocation2] sm:$0xff]
        %v352 = vld [vmem:[#allocation2 + $0x8] sm:$0xff]
        %v353 = vld [vmem:[#allocation2 + $0x10] sm:$0xff]
        %v354 = vld [vmem:[#allocation2 + $0x18] sm:$0xff]
        %v355 = vld [vmem:[#allocation2 + $0x20] sm:$0xff]
        %v356 = vld [vmem:[#allocation2 + $0x28] sm:$0xff]
        %v357 = vld [vmem:[#allocation2 + $0x30] sm:$0xff]
        %v358 = vld [vmem:[#allocation2 + $0x38] sm:$0xff]
        %v359 = vld [vmem:[#allocation2 + $0x40] sm:$0xff]
        %v360 = vld [vmem:[#allocation2 + $0x48] sm:$0xff]
        %v361 = vld [vmem:[#allocation2 + $0x50] sm:$0xff]
        %v362 = vld [vmem:[#allocation2 + $0x58] sm:$0xff]
        %v363 = vld [vmem:[#allocation2 + $0x60] sm:$0xff]
        %v364 = vld [vmem:[#allocation2 + $0x68] sm:$0xff]
        %v365 = vld [vmem:[#allocation2 + $0x70] sm:$0xff]
        %v366 = vld [vmem:[#allocation2 + $0x78] sm:$0xff]
        %v367 = vld [vmem:[#allocation2 + $0x80] sm:$0xff]
        %v368 = vld [vmem:[#allocation2 + $0x88] sm:$0xff]
        %v369 = vld [vmem:[#allocation2 + $0x90] sm:$0xff]
        %v370 = vld [vmem:[#allocation2 + $0x98] sm:$0xff]
        %v371 = vld [vmem:[#allocation2 + $0xa0] sm:$0xff]
        %v372 = vld [vmem:[#allocation2 + $0xa8] sm:$0xff]
        %v373 = vld [vmem:[#allocation2 + $0xb0] sm:$0xff]
        %v374 = vld [vmem:[#allocation2 + $0xb8] sm:$0xff]
        %v375 = vld [vmem:[#allocation2 + $0xc0] sm:$0xff]
        %v376 = vld [vmem:[#allocation2 + $0xc8] sm:$0xff]
        %v377 = vld [vmem:[#allocation2 + $0xd0] sm:$0xff]
        %v378 = vld [vmem:[#allocation2 + $0xd8] sm:$0xff]
        %v379 = vld [vmem:[#allocation2 + $0xe0] sm:$0xff]
        %v380 = vld [vmem:[#allocation2 + $0xe8] sm:$0xff]
        %v381 = vld [vmem:[#allocation2 + $0xf0] sm:$0xff]
        %v382 = vld [vmem:[#allocation2 + $0xf8] sm:$0xff]
        %v383 = vld [vmem:[#allocation2 + $0x100] sm:$0xff]
        %v384 = vld [vmem:[#allocation2 + $0x108] sm:$0xff]
        %v385 = vld [vmem:[#allocation2 + $0x110] sm:$0xff]
        %v386 = vld [vmem:[#allocation2 + $0x118] sm:$0xff]
        %v387 = vld [vmem:[#allocation2 + $0x120] sm:$0xff]
        %v388 = vld [vmem:[#allocation2 + $0x128] sm:$0xff]
        %v389 = vld [vmem:[#allocation2 + $0x130] sm:$0xff]
        %v390 = vld [vmem:[#allocation2 + $0x138] sm:$0xff]
        %v391 = vld [vmem:[#allocation2 + $0x140] sm:$0xff]
        %v392 = vld [vmem:[#allocation2 + $0x148] sm:$0xff]
        %v393 = vld [vmem:[#allocation2 + $0x150] sm:$0xff]
        %v394 = vld [vmem:[#allocation2 + $0x158] sm:$0xff]
        %v395 = vld [vmem:[#allocation2 + $0x160] sm:$0xff]
        %v396 = vld [vmem:[#allocation2 + $0x168] sm:$0xff]
        %v397 = vld [vmem:[#allocation2 + $0x170] sm:$0xff]
        %v398 = vld [vmem:[#allocation2 + $0x178] sm:$0xff]
        %v399 = vld [vmem:[#allocation2 + $0x180] sm:$0xff]
        %v400 = vld [vmem:[#allocation2 + $0x188] sm:$0xff]
        %v401 = vld [vmem:[#allocation2 + $0x190] sm:$0xff]
        %v402 = vld [vmem:[#allocation2 + $0x198] sm:$0xff]
        %v403 = vld [vmem:[#allocation2 + $0x1a0] sm:$0xff]
        %v404 = vld [vmem:[#allocation2 + $0x1a8] sm:$0xff]
        %v405 = vld [vmem:[#allocation2 + $0x1b0] sm:$0xff]
        %v406 = vld [vmem:[#allocation2 + $0x1b8] sm:$0xff]
        %v407 = vld [vmem:[#allocation2 + $0x1c0] sm:$0xff]
        %v408 = vld [vmem:[#allocation2 + $0x1c8] sm:$0xff]
        %v409 = vld [vmem:[#allocation2 + $0x1d0] sm:$0xff]
        %v410 = vld [vmem:[#allocation2 + $0x1d8] sm:$0xff]
        %v411 = vld [vmem:[#allocation2 + $0x1e0] sm:$0xff]
        %v412 = vld [vmem:[#allocation2 + $0x1e8] sm:$0xff]
        %v413 = vld [vmem:[#allocation2 + $0x1f0] sm:$0xff]
        %v414 = vld [vmem:[#allocation2 + $0x1f8] sm:$0xff]
        %v415 = vld [vmem:[%s232] sm:$0xff]
        %v416 = vld [vmem:[%s232 + $0x8] sm:$0xff]
        %v417 = vld [vmem:[%s232 + $0x10] sm:$0xff]
        %v418 = vld [vmem:[%s232 + $0x18] sm:$0xff]
        %v419 = vld [vmem:[%s232 + $0x20] sm:$0xff]
        %v420 = vld [vmem:[%s232 + $0x28] sm:$0xff]
        %v421 = vld [vmem:[%s232 + $0x30] sm:$0xff]
        %v422 = vld [vmem:[%s232 + $0x38] sm:$0xff]
        %v423 = vld [vmem:[%s232 + $0x40] sm:$0xff]
        %v424 = vld [vmem:[%s232 + $0x48] sm:$0xff]
        %v425 = vld [vmem:[%s232 + $0x50] sm:$0xff]
        %v426 = vld [vmem:[%s232 + $0x58] sm:$0xff]
        %v427 = vld [vmem:[%s232 + $0x60] sm:$0xff]
        %v428 = vld [vmem:[%s232 + $0x68] sm:$0xff]
        %v429 = vld [vmem:[%s232 + $0x70] sm:$0xff]
        %v430 = vld [vmem:[%s232 + $0x78] sm:$0xff]
        %v431 = vld [vmem:[%s232 + $0x80] sm:$0xff]
        %v432 = vld [vmem:[%s232 + $0x88] sm:$0xff]
        %v433 = vld [vmem:[%s232 + $0x90] sm:$0xff]
        %v434 = vld [vmem:[%s232 + $0x98] sm:$0xff]
        %v435 = vld [vmem:[%s232 + $0xa0] sm:$0xff]
        %v436 = vld [vmem:[%s232 + $0xa8] sm:$0xff]
        %v437 = vld [vmem:[%s232 + $0xb0] sm:$0xff]
        %v438 = vld [vmem:[%s232 + $0xb8] sm:$0xff]
        %v439 = vld [vmem:[%s232 + $0xc0] sm:$0xff]
        %v440 = vld [vmem:[%s232 + $0xc8] sm:$0xff]
        %v441 = vld [vmem:[%s232 + $0xd0] sm:$0xff]
        %v442 = vld [vmem:[%s232 + $0xd8] sm:$0xff]
        %v443 = vld [vmem:[%s232 + $0xe0] sm:$0xff]
        %v444 = vld [vmem:[%s232 + $0xe8] sm:$0xff]
        %v445 = vld [vmem:[%s232 + $0xf0] sm:$0xff]
        %v446 = vld [vmem:[%s232 + $0xf8] sm:$0xff]
        %v447 = vld [vmem:[%s241] sm:$0xff]
        %v448 = vld [vmem:[%s241 + $0x8] sm:$0xff]
        %v449 = vld [vmem:[%s241 + $0x10] sm:$0xff]
        %v450 = vld [vmem:[%s241 + $0x18] sm:$0xff]
        %v451 = vld [vmem:[%s241 + $0x20] sm:$0xff]
        %v452 = vld [vmem:[%s241 + $0x28] sm:$0xff]
        %v453 = vld [vmem:[%s241 + $0x30] sm:$0xff]
        %v454 = vld [vmem:[%s241 + $0x38] sm:$0xff]
        %v455 = vld [vmem:[%s241 + $0x40] sm:$0xff]
        %v456 = vld [vmem:[%s241 + $0x48] sm:$0xff]
        %v457 = vld [vmem:[%s241 + $0x50] sm:$0xff]
        %v458 = vld [vmem:[%s241 + $0x58] sm:$0xff]
        %v459 = vld [vmem:[%s241 + $0x60] sm:$0xff]
        %v460 = vld [vmem:[%s241 + $0x68] sm:$0xff]
        %v461 = vld [vmem:[%s241 + $0x70] sm:$0xff]
        %v462 = vld [vmem:[%s241 + $0x78] sm:$0xff]
        %v463 = vld [vmem:[%s241 + $0x80] sm:$0xff]
        %v464 = vld [vmem:[%s241 + $0x88] sm:$0xff]
        %v465 = vld [vmem:[%s241 + $0x90] sm:$0xff]
        %v466 = vld [vmem:[%s241 + $0x98] sm:$0xff]
        %v467 = vld [vmem:[%s241 + $0xa0] sm:$0xff]
        %v468 = vld [vmem:[%s241 + $0xa8] sm:$0xff]
        %v469 = vld [vmem:[%s241 + $0xb0] sm:$0xff]
        %v470 = vld [vmem:[%s241 + $0xb8] sm:$0xff]
        %v471 = vld [vmem:[%s241 + $0xc0] sm:$0xff]
        %v472 = vld [vmem:[%s241 + $0xc8] sm:$0xff]
        %v473 = vld [vmem:[%s241 + $0xd0] sm:$0xff]
        %v474 = vld [vmem:[%s241 + $0xd8] sm:$0xff]
        %v475 = vld [vmem:[%s241 + $0xe0] sm:$0xff]
        %v476 = vld [vmem:[%s241 + $0xe8] sm:$0xff]
        %v477 = vld [vmem:[%s241 + $0xf0] sm:$0xff]
        %v478 = vld [vmem:[%s241 + $0xf8] sm:$0xff]
        %479 = vmatprep.subr.mxu0 %v448
        %480 = vmatpush1.msra.mxu0 %v447
        %481 = vmatprep.subr.mxu0 %v450
        %482 = vmatpush1.msra.mxu0 %v449
        %483 = vmatprep.subr.mxu0 %v452
        %484 = vmatpush1.msra.mxu0 %v451
        %485 = vmatprep.subr.mxu0 %v454
        %486 = vmatpush1.msra.mxu0 %v453
        %487 = vmatprep.subr.mxu0 %v456
        %488 = vmatpush1.msra.mxu0 %v455
        %489 = vmatprep.subr.mxu0 %v458
        %490 = vmatpush1.msra.mxu0 %v457
        %491 = vmatprep.subr.mxu0 %v460
        %492 = vmatpush1.msra.mxu0 %v459
        %493 = vmatprep.subr.mxu0 %v462
        %494 = vmatpush1.msra.mxu0 %v461
        %495 = vmatprep.subr.mxu0 %v464
        %496 = vmatpush1.msra.mxu0 %v463
        %497 = vmatprep.subr.mxu0 %v466
        %498 = vmatpush1.msra.mxu0 %v465
        %499 = vmatprep.subr.mxu0 %v468
        %500 = vmatpush1.msra.mxu0 %v467
        %501 = vmatprep.subr.mxu0 %v470
        %502 = vmatpush1.msra.mxu0 %v469
        %503 = vmatprep.subr.mxu0 %v472
        %504 = vmatpush1.msra.mxu0 %v471
        %505 = vmatprep.subr.mxu0 %v474
        %506 = vmatpush1.msra.mxu0 %v473
        %507 = vmatprep.subr.mxu0 %v476
        %508 = vmatpush1.msra.mxu0 %v475
        %509 = vmatprep.subr.mxu0 %v478
        %510 = vmatpush1.msra.mxu0 %v477
        %511 = vmatprep.subr.mxu0 0.0
        %512 = vmatpush1.msra.mxu0 0.0
        %513 = vmatprep.subr.mxu0 0.0
        %514 = vmatpush1.msra.mxu0 0.0
        %515 = vmatprep.subr.mxu0 0.0
        %516 = vmatpush1.msra.mxu0 0.0
        %517 = vmatprep.subr.mxu0 0.0
        %518 = vmatpush1.msra.mxu0 0.0
        %519 = vmatprep.subr.mxu0 0.0
        %520 = vmatpush1.msra.mxu0 0.0
        %521 = vmatprep.subr.mxu0 0.0
        %522 = vmatpush1.msra.mxu0 0.0
        %523 = vmatprep.subr.mxu0 0.0
        %524 = vmatpush1.msra.mxu0 0.0
        %525 = vmatprep.subr.mxu0 0.0
        %526 = vmatpush1.msra.mxu0 0.0
        %527 = vmatprep.subr.mxu0 0.0
        %528 = vmatpush1.msra.mxu0 0.0
        %529 = vmatprep.subr.mxu0 0.0
        %530 = vmatpush1.msra.mxu0 0.0
        %531 = vmatprep.subr.mxu0 0.0
        %532 = vmatpush1.msra.mxu0 0.0
        %533 = vmatprep.subr.mxu0 0.0
        %534 = vmatpush1.msra.mxu0 0.0
        %535 = vmatprep.subr.mxu0 0.0
        %536 = vmatpush1.msra.mxu0 0.0
        %537 = vmatprep.subr.mxu0 0.0
        %538 = vmatpush1.msra.mxu0 0.0
        %539 = vmatprep.subr.mxu0 0.0
        %540 = vmatpush1.msra.mxu0 0.0
        %541 = vmatprep.subr.mxu0 0.0
        %542 = vmatpush1.msra.mxu0 0.0
        %543 = vmatprep.mubr.f32.mxu0 0.0
        %544 = vmatmul.mubr.f32.gmra.mrb[0].mxu0 %v415
        %v545 = vpop.f32.mrb[0].mxu0
        %v546 = vadd.f32 0.0, %v545
        %v547 = vpop.f32.mrb[0].mxu0
        %v548 = vadd.f32 0.0, %v547
        %549 = vmatprep.mubr.f32.mxu0 0.0
        %550 = vmatmul.mubr.f32.gmra.mrb[0].mxu0 %v416
        %v551 = vpop.f32.mrb[0].mxu0
        %v552 = vadd.f32 0.0, %v551
        %v553 = vpop.f32.mrb[0].mxu0
        %v554 = vadd.f32 0.0, %v553
        %555 = vmatprep.mubr.f32.mxu0 0.0
        %556 = vmatmul.mubr.f32.gmra.mrb[0].mxu0 %v417
        %v557 = vpop.f32.mrb[0].mxu0
        %v558 = vadd.f32 0.0, %v557
        %v559 = vpop.f32.mrb[0].mxu0
        %v560 = vadd.f32 0.0, %v559
        %561 = vmatprep.mubr.f32.mxu0 0.0
        %562 = vmatmul.mubr.f32.gmra.mrb[0].mxu0 %v418
        %v563 = vpop.f32.mrb[0].mxu0
        %v564 = vadd.f32 0.0, %v563
        %v565 = vpop.f32.mrb[0].mxu0
        %v566 = vadd.f32 0.0, %v565
        %567 = vmatprep.mubr.f32.mxu0 0.0
        %568 = vmatmul.mubr.f32.gmra.mrb[0].mxu0 %v419
        %v569 = vpop.f32.mrb[0].mxu0
        %v570 = vadd.f32 0.0, %v569
        %v571 = vpop.f32.mrb[0].mxu0
        %v572 = vadd.f32 0.0, %v571
        %573 = vmatprep.mubr.f32.mxu0 0.0
        %574 = vmatmul.mubr.f32.gmra.mrb[0].mxu0 %v420
        %v575 = vpop.f32.mrb[0].mxu0
        %v576 = vadd.f32 0.0, %v575
        %v577 = vpop.f32.mrb[0].mxu0
        %v578 = vadd.f32 0.0, %v577
        %579 = vmatprep.mubr.f32.mxu0 0.0
        %580 = vmatmul.mubr.f32.gmra.mrb[0].mxu0 %v421
        %v581 = vpop.f32.mrb[0].mxu0
        %v582 = vadd.f32 0.0, %v581
        %v583 = vpop.f32.mrb[0].mxu0
        %v584 = vadd.f32 0.0, %v583
        %585 = vmatprep.mubr.f32.mxu0 0.0
        %586 = vmatmul.mubr.f32.gmra.mrb[0].mxu0 %v422
        %v587 = vpop.f32.mrb[0].mxu0
        %v588 = vadd.f32 0.0, %v587
        %v589 = vpop.f32.mrb[0].mxu0
        %v590 = vadd.f32 0.0, %v589
        %591 = vmatprep.mubr.f32.mxu0 0.0
        %592 = vmatmul.mubr.f32.gmra.mrb[0].mxu0 %v423
        %v593 = vpop.f32.mrb[0].mxu0
        %v594 = vadd.f32 0.0, %v593
        %v595 = vpop.f32.mrb[0].mxu0
        %v596 = vadd.f32 0.0, %v595
        %597 = vmatprep.mubr.f32.mxu0 0.0
        %598 = vmatmul.mubr.f32.gmra.mrb[0].mxu0 %v424
        %v599 = vpop.f32.mrb[0].mxu0
        %v600 = vadd.f32 0.0, %v599
        %v601 = vpop.f32.mrb[0].mxu0
        %v602 = vadd.f32 0.0, %v601
        %603 = vmatprep.mubr.f32.mxu0 0.0
        %604 = vmatmul.mubr.f32.gmra.mrb[0].mxu0 %v425
        %v605 = vpop.f32.mrb[0].mxu0
        %v606 = vadd.f32 0.0, %v605
        %v607 = vpop.f32.mrb[0].mxu0
        %v608 = vadd.f32 0.0, %v607
        %609 = vmatprep.mubr.f32.mxu0 0.0
        %610 = vmatmul.mubr.f32.gmra.mrb[0].mxu0 %v426
        %v611 = vpop.f32.mrb[0].mxu0
        %v612 = vadd.f32 0.0, %v611
        %v613 = vpop.f32.mrb[0].mxu0
        %v614 = vadd.f32 0.0, %v613
        %615 = vmatprep.mubr.f32.mxu0 0.0
        %616 = vmatmul.mubr.f32.gmra.mrb[0].mxu0 %v427
        %v617 = vpop.f32.mrb[0].mxu0
        %v618 = vadd.f32 0.0, %v617
        %v619 = vpop.f32.mrb[0].mxu0
        %v620 = vadd.f32 0.0, %v619
        %621 = vmatprep.mubr.f32.mxu0 0.0
        %622 = vmatmul.mubr.f32.gmra.mrb[0].mxu0 %v428
        %v623 = vpop.f32.mrb[0].mxu0
        %v624 = vadd.f32 0.0, %v623
        %v625 = vpop.f32.mrb[0].mxu0
        %v626 = vadd.f32 0.0, %v625
        %627 = vmatprep.mubr.f32.mxu0 0.0
        %628 = vmatmul.mubr.f32.gmra.mrb[0].mxu0 %v429
        %v629 = vpop.f32.mrb[0].mxu0
        %v630 = vadd.f32 0.0, %v629
        %v631 = vpop.f32.mrb[0].mxu0
        %v632 = vadd.f32 0.0, %v631
        %633 = vmatprep.mubr.f32.mxu0 0.0
        %634 = vmatmul.mubr.f32.gmra.mrb[0].mxu0 %v430
        %v635 = vpop.f32.mrb[0].mxu0
        %v636 = vadd.f32 0.0, %v635
        %v637 = vpop.f32.mrb[0].mxu0
        %v638 = vadd.f32 0.0, %v637
        %639 = vmatprep.mubr.f32.mxu0 0.0
        %640 = vmatmul.mubr.f32.gmra.mrb[0].mxu0 %v431
        %v641 = vpop.f32.mrb[0].mxu0
        %v642 = vadd.f32 0.0, %v641
        %v643 = vpop.f32.mrb[0].mxu0
        %v644 = vadd.f32 0.0, %v643
        %645 = vmatprep.mubr.f32.mxu0 0.0
        %646 = vmatmul.mubr.f32.gmra.mrb[0].mxu0 %v432
        %v647 = vpop.f32.mrb[0].mxu0
        %v648 = vadd.f32 0.0, %v647
        %v649 = vpop.f32.mrb[0].mxu0
        %v650 = vadd.f32 0.0, %v649
        %651 = vmatprep.mubr.f32.mxu0 0.0
        %652 = vmatmul.mubr.f32.gmra.mrb[0].mxu0 %v433
        %v653 = vpop.f32.mrb[0].mxu0
        %v654 = vadd.f32 0.0, %v653
        %v655 = vpop.f32.mrb[0].mxu0
        %v656 = vadd.f32 0.0, %v655
        %657 = vmatprep.mubr.f32.mxu0 0.0
        %658 = vmatmul.mubr.f32.gmra.mrb[0].mxu0 %v434
        %v659 = vpop.f32.mrb[0].mxu0
        %v660 = vadd.f32 0.0, %v659
        %v661 = vpop.f32.mrb[0].mxu0
        %v662 = vadd.f32 0.0, %v661
        %663 = vmatprep.mubr.f32.mxu0 0.0
        %664 = vmatmul.mubr.f32.gmra.mrb[0].mxu0 %v435
        %v665 = vpop.f32.mrb[0].mxu0
        %v666 = vadd.f32 0.0, %v665
        %v667 = vpop.f32.mrb[0].mxu0
        %v668 = vadd.f32 0.0, %v667
        %669 = vmatprep.mubr.f32.mxu0 0.0
        %670 = vmatmul.mubr.f32.gmra.mrb[0].mxu0 %v436
        %v671 = vpop.f32.mrb[0].mxu0
        %v672 = vadd.f32 0.0, %v671
        %v673 = vpop.f32.mrb[0].mxu0
        %v674 = vadd.f32 0.0, %v673
        %675 = vmatprep.mubr.f32.mxu0 0.0
        %676 = vmatmul.mubr.f32.gmra.mrb[0].mxu0 %v437
        %v677 = vpop.f32.mrb[0].mxu0
        %v678 = vadd.f32 0.0, %v677
        %v679 = vpop.f32.mrb[0].mxu0
        %v680 = vadd.f32 0.0, %v679
        %681 = vmatprep.mubr.f32.mxu0 0.0
        %682 = vmatmul.mubr.f32.gmra.mrb[0].mxu0 %v438
        %v683 = vpop.f32.mrb[0].mxu0
        %v684 = vadd.f32 0.0, %v683
        %v685 = vpop.f32.mrb[0].mxu0
        %v686 = vadd.f32 0.0, %v685
        %687 = vmatprep.mubr.f32.mxu0 0.0
        %688 = vmatmul.mubr.f32.gmra.mrb[0].mxu0 %v439
        %v689 = vpop.f32.mrb[0].mxu0
        %v690 = vadd.f32 0.0, %v689
        %v691 = vpop.f32.mrb[0].mxu0
        %v692 = vadd.f32 0.0, %v691
        %693 = vmatprep.mubr.f32.mxu0 0.0
        %694 = vmatmul.mubr.f32.gmra.mrb[0].mxu0 %v440
        %v695 = vpop.f32.mrb[0].mxu0
        %v696 = vadd.f32 0.0, %v695
        %v697 = vpop.f32.mrb[0].mxu0
        %v698 = vadd.f32 0.0, %v697
        %699 = vmatprep.mubr.f32.mxu0 0.0
        %700 = vmatmul.mubr.f32.gmra.mrb[0].mxu0 %v441
        %v701 = vpop.f32.mrb[0].mxu0
        %v702 = vadd.f32 0.0, %v701
        %v703 = vpop.f32.mrb[0].mxu0
        %v704 = vadd.f32 0.0, %v703
        %705 = vmatprep.mubr.f32.mxu0 0.0
        %706 = vmatmul.mubr.f32.gmra.mrb[0].mxu0 %v442
        %v707 = vpop.f32.mrb[0].mxu0
        %v708 = vadd.f32 0.0, %v707
        %v709 = vpop.f32.mrb[0].mxu0
        %v710 = vadd.f32 0.0, %v709
        %711 = vmatprep.mubr.f32.mxu0 0.0
        %712 = vmatmul.mubr.f32.gmra.mrb[0].mxu0 %v443
        %v713 = vpop.f32.mrb[0].mxu0
        %v714 = vadd.f32 0.0, %v713
        %v715 = vpop.f32.mrb[0].mxu0
        %v716 = vadd.f32 0.0, %v715
        %717 = vmatprep.mubr.f32.mxu0 0.0
        %718 = vmatmul.mubr.f32.gmra.mrb[0].mxu0 %v444
        %v719 = vpop.f32.mrb[0].mxu0
        %v720 = vadd.f32 0.0, %v719
        %v721 = vpop.f32.mrb[0].mxu0
        %v722 = vadd.f32 0.0, %v721
        %723 = vmatprep.mubr.f32.mxu0 0.0
        %724 = vmatmul.mubr.f32.gmra.mrb[0].mxu0 %v445
        %v725 = vpop.f32.mrb[0].mxu0
        %v726 = vadd.f32 0.0, %v725
        %v727 = vpop.f32.mrb[0].mxu0
        %v728 = vadd.f32 0.0, %v727
        %729 = vmatprep.mubr.f32.mxu0 0.0
        %730 = vmatmul.mubr.f32.gmra.mrb[0].mxu0 %v446
        %v731 = vpop.f32.mrb[0].mxu0
        %v732 = vadd.f32 0.0, %v731
        %v733 = vpop.f32.mrb[0].mxu0
        %v734 = vadd.f32 0.0, %v733
        %735 = vdwg.mxu0
        %v736 = vadd.f32 %v351, %v546
        %v737 = vadd.f32 %v352, %v548
        %v738 = vadd.f32 %v353, %v552
        %v739 = vadd.f32 %v354, %v554
        %v740 = vadd.f32 %v355, %v558
        %v741 = vadd.f32 %v356, %v560
        %v742 = vadd.f32 %v357, %v564
        %v743 = vadd.f32 %v358, %v566
        %v744 = vadd.f32 %v359, %v570
        %v745 = vadd.f32 %v360, %v572
        %v746 = vadd.f32 %v361, %v576
        %v747 = vadd.f32 %v362, %v578
        %v748 = vadd.f32 %v363, %v582
        %v749 = vadd.f32 %v364, %v584
        %v750 = vadd.f32 %v365, %v588
        %v751 = vadd.f32 %v366, %v590
        %v752 = vadd.f32 %v367, %v594
        %v753 = vadd.f32 %v368, %v596
        %v754 = vadd.f32 %v369, %v600
        %v755 = vadd.f32 %v370, %v602
        %v756 = vadd.f32 %v371, %v606
        %v757 = vadd.f32 %v372, %v608
        %v758 = vadd.f32 %v373, %v612
        %v759 = vadd.f32 %v374, %v614
        %v760 = vadd.f32 %v375, %v618
        %v761 = vadd.f32 %v376, %v620
        %v762 = vadd.f32 %v377, %v624
        %v763 = vadd.f32 %v378, %v626
        %v764 = vadd.f32 %v379, %v630
        %v765 = vadd.f32 %v380, %v632
        %v766 = vadd.f32 %v381, %v636
        %v767 = vadd.f32 %v382, %v638
        %v768 = vadd.f32 %v383, %v642
        %v769 = vadd.f32 %v384, %v644
        %v770 = vadd.f32 %v385, %v648
        %v771 = vadd.f32 %v386, %v650
        %v772 = vadd.f32 %v387, %v654
        %v773 = vadd.f32 %v388, %v656
        %v774 = vadd.f32 %v389, %v660
        %v775 = vadd.f32 %v390, %v662
        %v776 = vadd.f32 %v391, %v666
        %v777 = vadd.f32 %v392, %v668
        %v778 = vadd.f32 %v393, %v672
        %v779 = vadd.f32 %v394, %v674
        %v780 = vadd.f32 %v395, %v678
        %v781 = vadd.f32 %v396, %v680
        %v782 = vadd.f32 %v397, %v684
        %v783 = vadd.f32 %v398, %v686
        %v784 = vadd.f32 %v399, %v690
        %v785 = vadd.f32 %v400, %v692
        %v786 = vadd.f32 %v401, %v696
        %v787 = vadd.f32 %v402, %v698
        %v788 = vadd.f32 %v403, %v702
        %v789 = vadd.f32 %v404, %v704
        %v790 = vadd.f32 %v405, %v708
        %v791 = vadd.f32 %v406, %v710
        %v792 = vadd.f32 %v407, %v714
        %v793 = vadd.f32 %v408, %v716
        %v794 = vadd.f32 %v409, %v720
        %v795 = vadd.f32 %v410, %v722
        %v796 = vadd.f32 %v411, %v726
        %v797 = vadd.f32 %v412, %v728
        %v798 = vadd.f32 %v413, %v732
        %v799 = vadd.f32 %v414, %v734
        %800 = vst [vmem:[#allocation2] sm:$0xff] %v736
        %801 = vst [vmem:[#allocation2 + $0x8] sm:$0xff] %v737
        %802 = vst [vmem:[#allocation2 + $0x10] sm:$0xff] %v738
        %803 = vst [vmem:[#allocation2 + $0x18] sm:$0xff] %v739
        %804 = vst [vmem:[#allocation2 + $0x20] sm:$0xff] %v740
        %805 = vst [vmem:[#allocation2 + $0x28] sm:$0xff] %v741
        %806 = vst [vmem:[#allocation2 + $0x30] sm:$0xff] %v742
        %807 = vst [vmem:[#allocation2 + $0x38] sm:$0xff] %v743
        %808 = vst [vmem:[#allocation2 + $0x40] sm:$0xff] %v744
        %809 = vst [vmem:[#allocation2 + $0x48] sm:$0xff] %v745
        %810 = vst [vmem:[#allocation2 + $0x50] sm:$0xff] %v746
        %811 = vst [vmem:[#allocation2 + $0x58] sm:$0xff] %v747
        %812 = vst [vmem:[#allocation2 + $0x60] sm:$0xff] %v748
        %813 = vst [vmem:[#allocation2 + $0x68] sm:$0xff] %v749
        %814 = vst [vmem:[#allocation2 + $0x70] sm:$0xff] %v750
        %815 = vst [vmem:[#allocation2 + $0x78] sm:$0xff] %v751
        %816 = vst [vmem:[#allocation2 + $0x80] sm:$0xff] %v752
        %817 = vst [vmem:[#allocation2 + $0x88] sm:$0xff] %v753
        %818 = vst [vmem:[#allocation2 + $0x90] sm:$0xff] %v754
        %819 = vst [vmem:[#allocation2 + $0x98] sm:$0xff] %v755
        %820 = vst [vmem:[#allocation2 + $0xa0] sm:$0xff] %v756
        %821 = vst [vmem:[#allocation2 + $0xa8] sm:$0xff] %v757
        %822 = vst [vmem:[#allocation2 + $0xb0] sm:$0xff] %v758
        %823 = vst [vmem:[#allocation2 + $0xb8] sm:$0xff] %v759
        %824 = vst [vmem:[#allocation2 + $0xc0] sm:$0xff] %v760
        %825 = vst [vmem:[#allocation2 + $0xc8] sm:$0xff] %v761
        %826 = vst [vmem:[#allocation2 + $0xd0] sm:$0xff] %v762
        %827 = vst [vmem:[#allocation2 + $0xd8] sm:$0xff] %v763
        %828 = vst [vmem:[#allocation2 + $0xe0] sm:$0xff] %v764
        %829 = vst [vmem:[#allocation2 + $0xe8] sm:$0xff] %v765
        %830 = vst [vmem:[#allocation2 + $0xf0] sm:$0xff] %v766
        %831 = vst [vmem:[#allocation2 + $0xf8] sm:$0xff] %v767
        %832 = vst [vmem:[#allocation2 + $0x100] sm:$0xff] %v768
        %833 = vst [vmem:[#allocation2 + $0x108] sm:$0xff] %v769
        %834 = vst [vmem:[#allocation2 + $0x110] sm:$0xff] %v770
        %835 = vst [vmem:[#allocation2 + $0x118] sm:$0xff] %v771
        %836 = vst [vmem:[#allocation2 + $0x120] sm:$0xff] %v772
        %837 = vst [vmem:[#allocation2 + $0x128] sm:$0xff] %v773
        %838 = vst [vmem:[#allocation2 + $0x130] sm:$0xff] %v774
        %839 = vst [vmem:[#allocation2 + $0x138] sm:$0xff] %v775
        %840 = vst [vmem:[#allocation2 + $0x140] sm:$0xff] %v776
        %841 = vst [vmem:[#allocation2 + $0x148] sm:$0xff] %v777
        %842 = vst [vmem:[#allocation2 + $0x150] sm:$0xff] %v778
        %843 = vst [vmem:[#allocation2 + $0x158] sm:$0xff] %v779
        %844 = vst [vmem:[#allocation2 + $0x160] sm:$0xff] %v780
        %845 = vst [vmem:[#allocation2 + $0x168] sm:$0xff] %v781
        %846 = vst [vmem:[#allocation2 + $0x170] sm:$0xff] %v782
        %847 = vst [vmem:[#allocation2 + $0x178] sm:$0xff] %v783
        %848 = vst [vmem:[#allocation2 + $0x180] sm:$0xff] %v784
        %849 = vst [vmem:[#allocation2 + $0x188] sm:$0xff] %v785
        %850 = vst [vmem:[#allocation2 + $0x190] sm:$0xff] %v786
        %851 = vst [vmem:[#allocation2 + $0x198] sm:$0xff] %v787
        %852 = vst [vmem:[#allocation2 + $0x1a0] sm:$0xff] %v788
        %853 = vst [vmem:[#allocation2 + $0x1a8] sm:$0xff] %v789
        %854 = vst [vmem:[#allocation2 + $0x1b0] sm:$0xff] %v790
        %855 = vst [vmem:[#allocation2 + $0x1b8] sm:$0xff] %v791
        %856 = vst [vmem:[#allocation2 + $0x1c0] sm:$0xff] %v792
        %857 = vst [vmem:[#allocation2 + $0x1c8] sm:$0xff] %v793
        %858 = vst [vmem:[#allocation2 + $0x1d0] sm:$0xff] %v794
        %859 = vst [vmem:[#allocation2 + $0x1d8] sm:$0xff] %v795
        %860 = vst [vmem:[#allocation2 + $0x1e0] sm:$0xff] %v796
        %861 = vst [vmem:[#allocation2 + $0x1e8] sm:$0xff] %v797
        %862 = vst [vmem:[#allocation2 + $0x1f0] sm:$0xff] %v798
        %863 = vst [vmem:[#allocation2 + $0x1f8] sm:$0xff] %v799
        %p864 = scmp.eq.s32.totalorder %s30, 2
        // Predicated region
        $region45: #{tpu_custom_call.1} parent=31 // pred_check
          %p865 = pneg %p864
        $region46: #{tpu_custom_call.1} parent=31 // pred_check_branch
          %867 = sbr.rel (%p865) target = $region48
        $region47: #{tpu_custom_call.1} parent=31 // pred_region
          %v868 = vld [vmem:[#allocation2] sm:$0xff]
          %v869 = vld [vmem:[#allocation2 + $0x8] sm:$0xff]
          %v870 = vld [vmem:[#allocation2 + $0x10] sm:$0xff]
          %v871 = vld [vmem:[#allocation2 + $0x18] sm:$0xff]
          %v872 = vld [vmem:[#allocation2 + $0x20] sm:$0xff]
          %v873 = vld [vmem:[#allocation2 + $0x28] sm:$0xff]
          %v874 = vld [vmem:[#allocation2 + $0x30] sm:$0xff]
          %v875 = vld [vmem:[#allocation2 + $0x38] sm:$0xff]
          %v876 = vld [vmem:[#allocation2 + $0x40] sm:$0xff]
          %v877 = vld [vmem:[#allocation2 + $0x48] sm:$0xff]
          %v878 = vld [vmem:[#allocation2 + $0x50] sm:$0xff]
          %v879 = vld [vmem:[#allocation2 + $0x58] sm:$0xff]
          %v880 = vld [vmem:[#allocation2 + $0x60] sm:$0xff]
          %v881 = vld [vmem:[#allocation2 + $0x68] sm:$0xff]
          %v882 = vld [vmem:[#allocation2 + $0x70] sm:$0xff]
          %v883 = vld [vmem:[#allocation2 + $0x78] sm:$0xff]
          %v884 = vld [vmem:[#allocation2 + $0x80] sm:$0xff]
          %v885 = vld [vmem:[#allocation2 + $0x88] sm:$0xff]
          %v886 = vld [vmem:[#allocation2 + $0x90] sm:$0xff]
          %v887 = vld [vmem:[#allocation2 + $0x98] sm:$0xff]
          %v888 = vld [vmem:[#allocation2 + $0xa0] sm:$0xff]
          %v889 = vld [vmem:[#allocation2 + $0xa8] sm:$0xff]
          %v890 = vld [vmem:[#allocation2 + $0xb0] sm:$0xff]
          %v891 = vld [vmem:[#allocation2 + $0xb8] sm:$0xff]
          %v892 = vld [vmem:[#allocation2 + $0xc0] sm:$0xff]
          %v893 = vld [vmem:[#allocation2 + $0xc8] sm:$0xff]
          %v894 = vld [vmem:[#allocation2 + $0xd0] sm:$0xff]
          %v895 = vld [vmem:[#allocation2 + $0xd8] sm:$0xff]
          %v896 = vld [vmem:[#allocation2 + $0xe0] sm:$0xff]
          %v897 = vld [vmem:[#allocation2 + $0xe8] sm:$0xff]
          %v898 = vld [vmem:[#allocation2 + $0xf0] sm:$0xff]
          %v899 = vld [vmem:[#allocation2 + $0xf8] sm:$0xff]
          %v900 = vld [vmem:[#allocation2 + $0x100] sm:$0xff]
          %v901 = vld [vmem:[#allocation2 + $0x108] sm:$0xff]
          %v902 = vld [vmem:[#allocation2 + $0x110] sm:$0xff]
          %v903 = vld [vmem:[#allocation2 + $0x118] sm:$0xff]
          %v904 = vld [vmem:[#allocation2 + $0x120] sm:$0xff]
          %v905 = vld [vmem:[#allocation2 + $0x128] sm:$0xff]
          %v906 = vld [vmem:[#allocation2 + $0x130] sm:$0xff]
          %v907 = vld [vmem:[#allocation2 + $0x138] sm:$0xff]
          %v908 = vld [vmem:[#allocation2 + $0x140] sm:$0xff]
          %v909 = vld [vmem:[#allocation2 + $0x148] sm:$0xff]
          %v910 = vld [vmem:[#allocation2 + $0x150] sm:$0xff]
          %v911 = vld [vmem:[#allocation2 + $0x158] sm:$0xff]
          %v912 = vld [vmem:[#allocation2 + $0x160] sm:$0xff]
          %v913 = vld [vmem:[#allocation2 + $0x168] sm:$0xff]
          %v914 = vld [vmem:[#allocation2 + $0x170] sm:$0xff]
          %v915 = vld [vmem:[#allocation2 + $0x178] sm:$0xff]
          %v916 = vld [vmem:[#allocation2 + $0x180] sm:$0xff]
          %v917 = vld [vmem:[#allocation2 + $0x188] sm:$0xff]
          %v918 = vld [vmem:[#allocation2 + $0x190] sm:$0xff]
          %v919 = vld [vmem:[#allocation2 + $0x198] sm:$0xff]
          %v920 = vld [vmem:[#allocation2 + $0x1a0] sm:$0xff]
          %v921 = vld [vmem:[#allocation2 + $0x1a8] sm:$0xff]
          %v922 = vld [vmem:[#allocation2 + $0x1b0] sm:$0xff]
          %v923 = vld [vmem:[#allocation2 + $0x1b8] sm:$0xff]
          %v924 = vld [vmem:[#allocation2 + $0x1c0] sm:$0xff]
          %v925 = vld [vmem:[#allocation2 + $0x1c8] sm:$0xff]
          %v926 = vld [vmem:[#allocation2 + $0x1d0] sm:$0xff]
          %v927 = vld [vmem:[#allocation2 + $0x1d8] sm:$0xff]
          %v928 = vld [vmem:[#allocation2 + $0x1e0] sm:$0xff]
          %v929 = vld [vmem:[#allocation2 + $0x1e8] sm:$0xff]
          %v930 = vld [vmem:[#allocation2 + $0x1f0] sm:$0xff]
          %v931 = vld [vmem:[#allocation2 + $0x1f8] sm:$0xff]
          %v932 = vld [vmem:[%s279] sm:$0x3]
          %v934 = vlaneseq
          %v935 = vshrl.u32 %v934, 7
          %v936 = vsub.s32 0, %v935
          %v937 = vrot.slane %v932, %v936
          %v938 = vlaneseq
          %v939 = vshrl.u32 %v938, 7
          %v940 = vsub.s32 1, %v939
          %v941 = vrot.slane %v932, %v940
          %v944 = vadd.f32 %v868, %v937
          %v945 = vadd.f32 %v869, %v941
          %v946 = vadd.f32 %v870, %v937
          %v947 = vadd.f32 %v871, %v941
          %v948 = vadd.f32 %v872, %v937
          %v949 = vadd.f32 %v873, %v941
          %v950 = vadd.f32 %v874, %v937
          %v951 = vadd.f32 %v875, %v941
          %v952 = vadd.f32 %v876, %v937
          %v953 = vadd.f32 %v877, %v941
          %v954 = vadd.f32 %v878, %v937
          %v955 = vadd.f32 %v879, %v941
          %v956 = vadd.f32 %v880, %v937
          %v957 = vadd.f32 %v881, %v941
          %v958 = vadd.f32 %v882, %v937
          %v959 = vadd.f32 %v883, %v941
          %v960 = vadd.f32 %v884, %v937
          %v961 = vadd.f32 %v885, %v941
          %v962 = vadd.f32 %v886, %v937
          %v963 = vadd.f32 %v887, %v941
          %v964 = vadd.f32 %v888, %v937
          %v965 = vadd.f32 %v889, %v941
          %v966 = vadd.f32 %v890, %v937
          %v967 = vadd.f32 %v891, %v941
          %v968 = vadd.f32 %v892, %v937
          %v969 = vadd.f32 %v893, %v941
          %v970 = vadd.f32 %v894, %v937
          %v971 = vadd.f32 %v895, %v941
          %v972 = vadd.f32 %v896, %v937
          %v973 = vadd.f32 %v897, %v941
          %v974 = vadd.f32 %v898, %v937
          %v975 = vadd.f32 %v899, %v941
          %v976 = vadd.f32 %v900, %v937
          %v977 = vadd.f32 %v901, %v941
          %v978 = vadd.f32 %v902, %v937
          %v979 = vadd.f32 %v903, %v941
          %v980 = vadd.f32 %v904, %v937
          %v981 = vadd.f32 %v905, %v941
          %v982 = vadd.f32 %v906, %v937
          %v983 = vadd.f32 %v907, %v941
          %v984 = vadd.f32 %v908, %v937
          %v985 = vadd.f32 %v909, %v941
          %v986 = vadd.f32 %v910, %v937
          %v987 = vadd.f32 %v911, %v941
          %v988 = vadd.f32 %v912, %v937
          %v989 = vadd.f32 %v913, %v941
          %v990 = vadd.f32 %v914, %v937
          %v991 = vadd.f32 %v915, %v941
          %v992 = vadd.f32 %v916, %v937
          %v993 = vadd.f32 %v917, %v941
          %v994 = vadd.f32 %v918, %v937
          %v995 = vadd.f32 %v919, %v941
          %v996 = vadd.f32 %v920, %v937
          %v997 = vadd.f32 %v921, %v941
          %v998 = vadd.f32 %v922, %v937
          %v999 = vadd.f32 %v923, %v941
          %v1000 = vadd.f32 %v924, %v937
          %v1001 = vadd.f32 %v925, %v941
          %v1002 = vadd.f32 %v926, %v937
          %v1003 = vadd.f32 %v927, %v941
          %v1004 = vadd.f32 %v928, %v937
          %v1005 = vadd.f32 %v929, %v941
          %v1006 = vadd.f32 %v930, %v937
          %v1007 = vadd.f32 %v931, %v941
          %1008 = vst [vmem:[%s272] sm:$0xff] %v944
          %1009 = vst [vmem:[%s272 + $0x8] sm:$0xff] %v945
          %1010 = vst [vmem:[%s272 + $0x10] sm:$0xff] %v946
          %1011 = vst [vmem:[%s272 + $0x18] sm:$0xff] %v947
          %1012 = vst [vmem:[%s272 + $0x20] sm:$0xff] %v948
          %1013 = vst [vmem:[%s272 + $0x28] sm:$0xff] %v949
          %1014 = vst [vmem:[%s272 + $0x30] sm:$0xff] %v950
          %1015 = vst [vmem:[%s272 + $0x38] sm:$0xff] %v951
          %1016 = vst [vmem:[%s272 + $0x40] sm:$0xff] %v952
          %1017 = vst [vmem:[%s272 + $0x48] sm:$0xff] %v953
          %1018 = vst [vmem:[%s272 + $0x50] sm:$0xff] %v954
          %1019 = vst [vmem:[%s272 + $0x58] sm:$0xff] %v955
          %1020 = vst [vmem:[%s272 + $0x60] sm:$0xff] %v956
          %1021 = vst [vmem:[%s272 + $0x68] sm:$0xff] %v957
          %1022 = vst [vmem:[%s272 + $0x70] sm:$0xff] %v958
          %1023 = vst [vmem:[%s272 + $0x78] sm:$0xff] %v959
          %1024 = vst [vmem:[%s272 + $0x80] sm:$0xff] %v960
          %1025 = vst [vmem:[%s272 + $0x88] sm:$0xff] %v961
          %1026 = vst [vmem:[%s272 + $0x90] sm:$0xff] %v962
          %1027 = vst [vmem:[%s272 + $0x98] sm:$0xff] %v963
          %1028 = vst [vmem:[%s272 + $0xa0] sm:$0xff] %v964
          %1029 = vst [vmem:[%s272 + $0xa8] sm:$0xff] %v965
          %1030 = vst [vmem:[%s272 + $0xb0] sm:$0xff] %v966
          %1031 = vst [vmem:[%s272 + $0xb8] sm:$0xff] %v967
          %1032 = vst [vmem:[%s272 + $0xc0] sm:$0xff] %v968
          %1033 = vst [vmem:[%s272 + $0xc8] sm:$0xff] %v969
          %1034 = vst [vmem:[%s272 + $0xd0] sm:$0xff] %v970
          %1035 = vst [vmem:[%s272 + $0xd8] sm:$0xff] %v971
          %1036 = vst [vmem:[%s272 + $0xe0] sm:$0xff] %v972
          %1037 = vst [vmem:[%s272 + $0xe8] sm:$0xff] %v973
          %1038 = vst [vmem:[%s272 + $0xf0] sm:$0xff] %v974
          %1039 = vst [vmem:[%s272 + $0xf8] sm:$0xff] %v975
          %1040 = vst [vmem:[%s272 + $0x100] sm:$0xff] %v976
          %1041 = vst [vmem:[%s272 + $0x108] sm:$0xff] %v977
          %1042 = vst [vmem:[%s272 + $0x110] sm:$0xff] %v978
          %1043 = vst [vmem:[%s272 + $0x118] sm:$0xff] %v979
          %1044 = vst [vmem:[%s272 + $0x120] sm:$0xff] %v980
          %1045 = vst [vmem:[%s272 + $0x128] sm:$0xff] %v981
          %1046 = vst [vmem:[%s272 + $0x130] sm:$0xff] %v982
          %1047 = vst [vmem:[%s272 + $0x138] sm:$0xff] %v983
          %1048 = vst [vmem:[%s272 + $0x140] sm:$0xff] %v984
          %1049 = vst [vmem:[%s272 + $0x148] sm:$0xff] %v985
          %1050 = vst [vmem:[%s272 + $0x150] sm:$0xff] %v986
          %1051 = vst [vmem:[%s272 + $0x158] sm:$0xff] %v987
          %1052 = vst [vmem:[%s272 + $0x160] sm:$0xff] %v988
          %1053 = vst [vmem:[%s272 + $0x168] sm:$0xff] %v989
          %1054 = vst [vmem:[%s272 + $0x170] sm:$0xff] %v990
          %1055 = vst [vmem:[%s272 + $0x178] sm:$0xff] %v991
          %1056 = vst [vmem:[%s272 + $0x180] sm:$0xff] %v992
          %1057 = vst [vmem:[%s272 + $0x188] sm:$0xff] %v993
          %1058 = vst [vmem:[%s272 + $0x190] sm:$0xff] %v994
          %1059 = vst [vmem:[%s272 + $0x198] sm:$0xff] %v995
          %1060 = vst [vmem:[%s272 + $0x1a0] sm:$0xff] %v996
          %1061 = vst [vmem:[%s272 + $0x1a8] sm:$0xff] %v997
          %1062 = vst [vmem:[%s272 + $0x1b0] sm:$0xff] %v998
          %1063 = vst [vmem:[%s272 + $0x1b8] sm:$0xff] %v999
          %1064 = vst [vmem:[%s272 + $0x1c0] sm:$0xff] %v1000
          %1065 = vst [vmem:[%s272 + $0x1c8] sm:$0xff] %v1001
          %1066 = vst [vmem:[%s272 + $0x1d0] sm:$0xff] %v1002
          %1067 = vst [vmem:[%s272 + $0x1d8] sm:$0xff] %v1003
          %1068 = vst [vmem:[%s272 + $0x1e0] sm:$0xff] %v1004
          %1069 = vst [vmem:[%s272 + $0x1e8] sm:$0xff] %v1005
          %1070 = vst [vmem:[%s272 + $0x1f0] sm:$0xff] %v1006
          %1071 = vst [vmem:[%s272 + $0x1f8] sm:$0xff] %v1007
        $region48: #{tpu_custom_call.1} parent=31 // pred_fallthru
          _
        %s1072 = sand.u32 %s134, 1
        %s1073 = scalar_lea.sflag [#allocation5], %s1072
        %s1074 = sand.u32 %s134, 1
        %s1075 = smul.addr %s1074, 512
        %s1076 = scalar_lea.vmem [#allocation8], %s1075
        // Predicated region
        $region49: #{tpu_custom_call.1} parent=31 // pred_check
          %p1077 = pneg %p144
        $region50: #{tpu_custom_call.1} parent=31 // pred_check_branch
          %1079 = sbr.rel (%p1077) target = $region52
        $region51: #{tpu_custom_call.1} parent=31 // pred_region
          %s1080 = smul.u32 32, %s28
          %s1081 = smul.u32 2, %s29
          %s1083 = ssub.s32 8192, 8192
          %1084 = vsyncadd %s1073, %s1083
          %s1085 = smul.addr %s1080, 4
          %s1086 = sadd.s32 %s1081, %s1085
          %s1087 = smul.addr %s1086, 128
          %s1088 = scalar_lea.hbm %s3, %s1087
          %s1089 = sshll.u32 %s1076, 4
          %s1090 = int_to_ptr.vmem [resolvable:$true] %s1089
          %1095 = dma.vmem_to_hbm [thread:$0]  %s1090, 8192, %s1088, %s1073, 256, 512, 16
        $region52: #{tpu_custom_call.1} parent=31 // pred_fallthru
          _
      $region32: #{tpu_custom_call.1} parent=5 // pred_fallthru
        _
      %p1096 = scmp.le.s32.totalorder 2, %s18
      // Predicated region
      $region53: #{tpu_custom_call.1} parent=5 // pred_check
        %p1097 = pneg %p1096
      $region54: #{tpu_custom_call.1} parent=5 // pred_check_branch
        %1099 = sbr.rel (%p1097) target = $region56
      $region55: #{tpu_custom_call.1} parent=5 // pred_region
        %s1100 = ssub.s32 %s18, 2
        // Predicated region
        $region57: #{tpu_custom_call.1} parent=55 // pred_check
          %p1101 = pneg %p150
        $region58: #{tpu_custom_call.1} parent=55 // pred_check_branch
          %1103 = sbr.rel (%p1101) target = $region60
        $region59: #{tpu_custom_call.1} parent=55 // pred_region
          %s1104 = sand.u32 %s135, 1
          %s1105 = scalar_lea.sflag [#allocation5], %s1104
          %s1106 = sand.u32 %s135, 1
          %s1107 = smul.addr %s1106, 512
          %s1108 = scalar_lea.vmem [#allocation8], %s1107
          %1109 = dma.done %s1105, 8192
        $region60: #{tpu_custom_call.1} parent=55 // pred_fallthru
          _
      $region56: #{tpu_custom_call.1} parent=5 // pred_fallthru
        _
    $region6: #{tpu_custom_call.1} parent=1 // loop_footer
      %s22 = sadd.s32 1, %s18
    $region7: #{tpu_custom_call.1} parent=1 // loop_footer_branch
      %17 = sbr.rel target = $region3
    $region8: #{tpu_custom_call.1} parent=1 // loop_exit
      _
    %1110 = vsyncpa [#allocation4], 1
    %s1111 = scalar_lea.sflag [#allocation4], 1
    %1112 = vsyncpa %s1111, 1
    %1113 = vsyncpa [#allocation7], 1
    %s1114 = scalar_lea.sflag [#allocation7], 1
    %1115 = vsyncpa %s1114, 1
    %1116 = vsyncpa [#allocation5], 1
    %s1117 = scalar_lea.sflag [#allocation5], 1
    %1118 = vsyncpa %s1117, 1

</llo_original>
